<compile_context>
chip_gen: v6e
topology: v6e:2x2x1
jax: 0.10.0
libtpu: 0.0.40
codegen_flags: <defaults>
</compile_context>

<pallas_src>
import math

import jax
import jax.numpy as jnp
from jax import lax
from jax.experimental import pallas as pl
from jax.experimental.pallas import tpu as pltpu

IN_FEATURES = 48
OUT_FEATURES = 8
_INV_SQRT_D = 1.0 / math.sqrt(OUT_FEATURES)


def ultimus_kernel(x_ref, w_ref, o_ref):
    """Ultimus forward for one instance, everything resident in VMEM.

    x_ref: (B, IN)        input activations (f32)
    w_ref: (IN, 4*OUT)    packed weights: lanes [0:3*OUT) = [Wq^T | Wk^T | Wv^T],
                          lanes [3*OUT:4*OUT) = W_out in its native (IN, OUT) layout
    o_ref: (B, IN)        output
    """
    x = x_ref[...]                                                # (B, IN) f32
    w_qkv = w_ref[:, : 3 * OUT_FEATURES]                          # (IN, 3*OUT)
    w_o = w_ref[:, 3 * OUT_FEATURES:]                             # (IN, OUT) = W_out

    # One fused MXU pass for Q/K/V (3 pushes -> 1 push; all N<=24 lanes in one vreg).
    qkv = jnp.dot(x, w_qkv, preferred_element_type=jnp.float32)   # (B, 3*OUT)
    q = qkv[:, 0 * OUT_FEATURES:1 * OUT_FEATURES]                 # (B, OUT)
    k = qkv[:, 1 * OUT_FEATURES:2 * OUT_FEATURES]
    v = qkv[:, 2 * OUT_FEATURES:3 * OUT_FEATURES]

    # scores = Q^T @ K / sqrt(OUT): contract dim 0 with dim 0 — no transpose
    # materialized. Keep the explicit scale (exact PyTorch f32 rounding).
    scores = lax.dot_general(
        q, k, dimension_numbers=(((0,), (0,)), ((), ())),
        preferred_element_type=jnp.float32,
    ) * jnp.float32(_INV_SQRT_D)                                  # (OUT, OUT)

    # Softmax over the last dim (== F.softmax(dim=None) on a 2-D tensor).
    m = jnp.max(scores, axis=-1, keepdims=True)
    e = jnp.exp(scores - m)
    denom = jnp.sum(e, axis=-1, keepdims=True)
    am = e * pl.reciprocal(denom, approx=False)                   # (OUT, OUT)

    z = jnp.dot(v, am, preferred_element_type=jnp.float32)        # (B, OUT)

    # out = Z @ W_out^T: contract z dim 1 with W_out dim 1 — no transpose.
    out = lax.dot_general(
        z, w_o, dimension_numbers=(((1,), (1,)), ((), ())),
        preferred_element_type=jnp.float32,
    )                                                             # (B, IN)
    o_ref[...] = out.astype(o_ref.dtype)


def prepare_ultimus_params(w_q, w_k, w_v, w_out):
    """One-time parameter prep — call where params are created, NOT per forward.

    w_q/w_k/w_v: (OUT, IN) PyTorch nn.Linear layout; w_out: (IN, OUT) layout.
    Returns a single (IN, 4*OUT) slab: [Wq^T | Wk^T | Wv^T | W_out].
    """
    return jnp.concatenate([w_q.T, w_k.T, w_v.T, w_out], axis=1)  # (48, 32)


def ultimus_forward(x, w_all):
    """Single instance: x (B, IN) -> (B, IN). Ungridded single-shot call."""
    B = x.shape[0]
    vmem = pl.BlockSpec(memory_space=pltpu.MemorySpace.VMEM)
    return pl.pallas_call(
        ultimus_kernel,
        out_shape=jax.ShapeDtypeStruct((B, IN_FEATURES), jnp.float32),
        in_specs=[vmem, vmem],
        out_specs=vmem,
    )(x, w_all)


def ultimus_forward_batched(xs, w_all):
    """N independent instances fused into one pallas_call.

    xs: (N, B, IN) -> (N, B, IN). Weights are DMA'd once and stay VMEM-resident
    across all grid steps (constant index_map); the instance axis is "parallel"
    so v7x shards it across both TensorCores.
    """
    N, B, _ = xs.shape
    return pl.pallas_call(
        ultimus_kernel,
        out_shape=jax.ShapeDtypeStruct((N, B, IN_FEATURES), jnp.float32),
        grid=(N,),
        in_specs=[
            pl.BlockSpec((None, B, IN_FEATURES), lambda n: (n, 0, 0)),
            pl.BlockSpec((IN_FEATURES, 4 * OUT_FEATURES), lambda n: (0, 0)),
        ],
        out_specs=pl.BlockSpec((None, B, IN_FEATURES), lambda n: (n, 0, 0)),
        compiler_params=pltpu.CompilerParams(
            dimension_semantics=("parallel",)),
    )(xs, w_all)


def ultimus_reference(x, w_q, w_k, w_v, w_out):
    """Pure-jnp reference in PyTorch weight layout."""
    f32 = jnp.float32
    q = jnp.dot(x, w_q.T, preferred_element_type=f32)
    k = jnp.dot(x, w_k.T, preferred_element_type=f32)
    v = jnp.dot(x, w_v.T, preferred_element_type=f32)
    scores = jnp.dot(q.T, k, preferred_element_type=f32) / jnp.sqrt(
        f32(OUT_FEATURES))
    am = jax.nn.softmax(scores, axis=-1)
    z = jnp.dot(v, am, preferred_element_type=f32)
    return jnp.dot(z, w_out.T, preferred_element_type=f32)


if __name__ == "__main__":
    key = jax.random.PRNGKey(0)
    k_x, k_xs, k_q, k_k, k_v, k_o = jax.random.split(key, 6)

    B = 16          # rows per instance
    N = 4           # fused independent instances for the gridded path
    x = jax.random.normal(k_x, (B, IN_FEATURES), dtype=jnp.float32)
    xs = jax.random.normal(k_xs, (N, B, IN_FEATURES), dtype=jnp.float32)

    # Deterministic synthetic parameters (PyTorch nn.Linear weight shapes).
    w_q = jax.random.normal(k_q, (OUT_FEATURES, IN_FEATURES), jnp.float32) * 0.1
    w_k = jax.random.normal(k_k, (OUT_FEATURES, IN_FEATURES), jnp.float32) * 0.1
    w_v = jax.random.normal(k_v, (OUT_FEATURES, IN_FEATURES), jnp.float32) * 0.1
    w_out = jax.random.normal(k_o, (IN_FEATURES, OUT_FEATURES), jnp.float32) * 0.1

    # One-time prep (fuse + transpose into a single VMEM slab).
    w_all = prepare_ultimus_params(w_q, w_k, w_v, w_out)

    # Single-instance path.
    out = jax.block_until_ready(ultimus_forward(x, w_all))
    ref = ultimus_reference(x, w_q, w_k, w_v, w_out)
    assert out.shape == (B, IN_FEATURES)
    assert jnp.allclose(out, ref, atol=1e-5, rtol=1e-5), "single-instance mismatch"

    # Fused / gridded multi-instance path (weights VMEM-resident across steps).
    out_b = jax.block_until_ready(ultimus_forward_batched(xs, w_all))
    ref_b = jax.vmap(lambda xi: ultimus_reference(xi, w_q, w_k, w_v, w_out))(xs)
    assert out_b.shape == (N, B, IN_FEATURES)
    assert jnp.allclose(out_b, ref_b, atol=1e-5, rtol=1e-5), "batched mismatch"

    print("KERNEL_OK")
</pallas_src>

<mosaic_0001>
module attributes {stable_mosaic.version = 11 : i64} {
  func.func @ultimus_kernel(%arg0: memref<16x48xf32, #tpu.memory_space<vmem>>, %arg1: memref<48x32xf32, #tpu.memory_space<vmem>>, %arg2: memref<16x48xf32, #tpu.memory_space<vmem>>) attributes {dimension_semantics = [], scalar_prefetch = 0 : i64, scratch_operands = 0 : i64, tpu.core_type = #tpu.core_type<tc>} {
    %c0 = arith.constant 0 : index
    %c0_0 = arith.constant 0 : index
    %0 = vector.load %arg0[%c0, %c0_0] : memref<16x48xf32, #tpu.memory_space<vmem>>, vector<16x48xf32>
    %c0_1 = arith.constant 0 : index
    %c0_2 = arith.constant 0 : index
    %1 = vector.load %arg1[%c0_1, %c0_2] : memref<48x32xf32, #tpu.memory_space<vmem>>, vector<48x24xf32>
    %c0_3 = arith.constant 0 : index
    %c24 = arith.constant 24 : index
    %2 = vector.load %arg1[%c0_3, %c24] : memref<48x32xf32, #tpu.memory_space<vmem>>, vector<48x8xf32>
    %cst = arith.constant dense<0.000000e+00> : vector<16x24xf32>
    %3 = tpu.matmul %0, %1, %cst {dimension_numbers = #tpu.dot_dimension_numbers<[1], [0], [0], [1], [0, 0, 1, 1], [], []>} : vector<16x48xf32>, vector<48x24xf32>, vector<16x24xf32> -> vector<16x24xf32>
    %4 = vector.extract_strided_slice %3 {offsets = [0, 0], sizes = [16, 8], strides = [1, 1]} : vector<16x24xf32> to vector<16x8xf32>
    %5 = vector.extract_strided_slice %3 {offsets = [0, 8], sizes = [16, 8], strides = [1, 1]} : vector<16x24xf32> to vector<16x8xf32>
    %6 = vector.extract_strided_slice %3 {offsets = [0, 16], sizes = [16, 8], strides = [1, 1]} : vector<16x24xf32> to vector<16x8xf32>
    %cst_4 = arith.constant dense<0.000000e+00> : vector<8x8xf32>
    %7 = tpu.matmul %4, %5, %cst_4 {dimension_numbers = #tpu.dot_dimension_numbers<[0], [0], [1], [1], [0, 1, 1, 1], [], []>} : vector<16x8xf32>, vector<16x8xf32>, vector<8x8xf32> -> vector<8x8xf32>
    %cst_5 = arith.constant 0.353553385 : f32
    %8 = vector.broadcast %cst_5 : f32 to vector<8x8xf32>
    %9 = arith.mulf %7, %8 : vector<8x8xf32>
    %cst_6 = arith.constant dense<0xFF800000> : vector<8xf32>
    %10 = vector.multi_reduction <maximumf>, %9, %cst_6 [1] : vector<8x8xf32> to vector<8xf32>
    %11 = vector.shape_cast %10 : vector<8xf32> to vector<8x1xf32>
    %12 = vector.broadcast %11 : vector<8x1xf32> to vector<8x8xf32>
    %13 = arith.subf %9, %12 : vector<8x8xf32>
    %14 = math.exp %13 : vector<8x8xf32>
    %cst_7 = arith.constant dense<0.000000e+00> : vector<8xf32>
    %15 = vector.multi_reduction <add>, %14, %cst_7 [1] : vector<8x8xf32> to vector<8xf32>
    %16 = vector.shape_cast %15 : vector<8xf32> to vector<8x1xf32>
    %17 = tpu.reciprocal %16 : vector<8x1xf32> -> vector<8x1xf32>
    %18 = vector.broadcast %17 : vector<8x1xf32> to vector<8x8xf32>
    %19 = arith.mulf %14, %18 : vector<8x8xf32>
    %cst_8 = arith.constant dense<0.000000e+00> : vector<16x8xf32>
    %20 = tpu.matmul %6, %19, %cst_8 {dimension_numbers = #tpu.dot_dimension_numbers<[1], [0], [0], [1], [0, 0, 1, 1], [], []>} : vector<16x8xf32>, vector<8x8xf32>, vector<16x8xf32> -> vector<16x8xf32>
    %cst_9 = arith.constant dense<0.000000e+00> : vector<16x48xf32>
    %21 = tpu.matmul %20, %2, %cst_9 {dimension_numbers = #tpu.dot_dimension_numbers<[1], [1], [0], [0], [0, 0, 1, 0], [], []>} : vector<16x8xf32>, vector<48x8xf32>, vector<16x48xf32> -> vector<16x48xf32>
    %c0_10 = arith.constant 0 : index
    %c0_11 = arith.constant 0 : index
    %22 = vector.load %arg2[%c0_10, %c0_11] : memref<16x48xf32, #tpu.memory_space<vmem>>, vector<16x48xf32>
    tpu.vector_store %arg2[%c0_10, %c0_11], %21 {strides = array<i32>} : memref<16x48xf32, #tpu.memory_space<vmem>>, vector<16x48xf32>,
    return
  }
}

</mosaic_0001>

<llo_original>
// kernel: tpu_custom_call.1
$region0: #{tpu_custom_call.1}
  #allocation0 [shape = 'u32[]', space=smem, size = 0x4, offset = 0x4, fixed_abs, tag = 'smem constant byte address 0x4 - core index']
  #allocation1 [shape = 'u32[144,128]{1,0:T(1,128)}', space=vmem, size = 0x12000, scoped, tag = 'internal scratch']
  %s0 = inlined_call_operand.vmem [shape: f32[16,48], index: 0, kind: input, shape index: {}]
  %s1 = inlined_call_operand.vmem [shape: f32[48,32], index: 1, kind: input, shape index: {}]
  %s2 = inlined_call_operand.hbm [shape: f32[16,48], index: 2, kind: output, shape index: {}]
  %s3 = sld [smem:[#allocation0]]
  $region18: #{tpu_custom_call.1} parent=0
    _
  %s5 = ssub.s32 1, %s3
  %s6 = scalar_select 0, %s5, %s3
  $region1: #{tpu_custom_call.1} parent=0
    #allocation2 [shape = 'u8[8192]{0}', space=vmem, size = 0x2000, scoped, tag = 'output window, operand 0, single buffered']
    #allocation3 [shape = 's32[1]{0}', space=sflag, size = 0x4, scoped, tag = 'scoped memory for tpu_custom_call.1']
    %7 = vsyncpa [#allocation3], 0
    // Predicated region
    $region2: #{tpu_custom_call.1} parent=1 // pred_check
      _
    $region3: #{tpu_custom_call.1} parent=1 // pred_check_branch
      %9 = sbr.rel (0) target = $region5
    $region4: #{tpu_custom_call.1} parent=1 // pred_region
      _
    $region5: #{tpu_custom_call.1} parent=1 // pred_fallthru
      _
    // Predicated region
    $region6: #{tpu_custom_call.1} parent=1 // pred_check
      _
    $region7: #{tpu_custom_call.1} parent=1 // pred_check_branch
      %11 = sbr.rel (0) target = $region9
    $region8: #{tpu_custom_call.1} parent=1 // pred_region
      _
    $region9: #{tpu_custom_call.1} parent=1 // pred_fallthru
      _
    %v12 = vld [vmem:[%s0] sm:$0xff]
    %v13 = vld [vmem:[%s0 + $0x8] sm:$0xff]
    %v14 = vld [vmem:[%s1] sm:$0xff]
    %v15 = vld [vmem:[%s1 + $0x8] sm:$0xff]
    %v16 = vld [vmem:[%s1 + $0x10] sm:$0xff]
    %v17 = vld [vmem:[%s1 + $0x18] sm:$0xff]
    %v18 = vld [vmem:[%s1 + $0x20] sm:$0xff]
    %v19 = vld [vmem:[%s1 + $0x28] sm:$0xff]
    %vm20 = vcmask 392192
    %v22 = vsel %vm20, %v12, 0
    %v25 = vsel %vm20, %v13, 0
    %27 = vmatprep.subr.mxu0 0.0
    %28 = vmatpush1.msra.mxu0 0.0
    %29 = vmatprep.subr.mxu0 0.0
    %30 = vmatpush1.msra.mxu0 0.0
    %31 = vmatprep.subr.mxu0 0.0
    %32 = vmatpush1.msra.mxu0 0.0
    %33 = vmatprep.subr.mxu0 0.0
    %34 = vmatpush1.msra.mxu0 0.0
    %35 = vmatprep.subr.mxu0 0.0
    %36 = vmatpush1.msra.mxu0 0.0
    %37 = vmatprep.subr.mxu0 0.0
    %38 = vmatpush1.msra.mxu0 0.0
    %39 = vmatprep.subr.mxu0 0.0
    %40 = vmatpush1.msra.mxu0 0.0
    %41 = vmatprep.subr.mxu0 0.0
    %42 = vmatpush1.msra.mxu0 0.0
    %43 = vmatprep.subr.mxu0 0.0
    %44 = vmatpush1.msra.mxu0 0.0
    %45 = vmatprep.subr.mxu0 0.0
    %46 = vmatpush1.msra.mxu0 0.0
    %47 = vmatprep.subr.mxu0 0.0
    %48 = vmatpush1.msra.mxu0 %v19
    %49 = vmatprep.subr.mxu0 0.0
    %50 = vmatpush1.msra.mxu0 %v18
    %51 = vmatprep.subr.mxu0 0.0
    %52 = vmatpush1.msra.mxu0 %v17
    %53 = vmatprep.subr.mxu0 0.0
    %54 = vmatpush1.msra.mxu0 %v16
    %55 = vmatprep.subr.mxu0 0.0
    %56 = vmatpush1.msra.mxu0 %v15
    %57 = vmatprep.subr.mxu0 0.0
    %58 = vmatpush1.msra.mxu0 %v14
    %59 = vmatprep.subr.mxu0 0.0
    %60 = vmatpush2.msra.mxu0 0.0
    %61 = vmatprep.subr.mxu0 0.0
    %62 = vmatpush2.msra.mxu0 0.0
    %63 = vmatprep.subr.mxu0 0.0
    %64 = vmatpush2.msra.mxu0 0.0
    %65 = vmatprep.subr.mxu0 0.0
    %66 = vmatpush2.msra.mxu0 0.0
    %67 = vmatprep.subr.mxu0 0.0
    %68 = vmatpush2.msra.mxu0 0.0
    %69 = vmatprep.subr.mxu0 0.0
    %70 = vmatpush2.msra.mxu0 0.0
    %71 = vmatprep.subr.mxu0 0.0
    %72 = vmatpush2.msra.mxu0 0.0
    %73 = vmatprep.subr.mxu0 0.0
    %74 = vmatpush2.msra.mxu0 0.0
    %75 = vmatprep.subr.mxu0 0.0
    %76 = vmatpush2.msra.mxu0 0.0
    %77 = vmatprep.subr.mxu0 0.0
    %78 = vmatpush2.msra.mxu0 0.0
    %79 = vmatprep.subr.mxu0 0.0
    %80 = vmatpush2.msra.mxu0 0.0
    %81 = vmatprep.subr.mxu0 0.0
    %82 = vmatpush2.msra.mxu0 0.0
    %83 = vmatprep.subr.mxu0 0.0
    %84 = vmatpush2.msra.mxu0 0.0
    %85 = vmatprep.subr.mxu0 0.0
    %86 = vmatpush2.msra.mxu0 0.0
    %87 = vmatprep.subr.mxu0 0.0
    %88 = vmatpush2.msra.mxu0 0.0
    %89 = vmatprep.subr.mxu0 0.0
    %90 = vmatpush2.msra.mxu0 0.0
    %91 = vmatprep.mubr.f32.mxu0 0.0
    %92 = vmatmul.mubr.f32.gmra.mxu0 %v22
    %v93 = vpop.f32.mrf.mxu0
    %v94 = vadd.f32 0.0, %v93
    %v95 = vpop.f32.mrf.mxu0
    %96 = vmatprep.mubr.f32.mxu0 0.0
    %97 = vmatmul.mubr.f32.gmra.mxu0 %v25
    %v98 = vpop.f32.mrf.mxu0
    %v99 = vadd.f32 0.0, %v98
    %v100 = vpop.f32.mrf.mxu0
    %101 = vdwg.mxu0
    %102 = vxpose.xlu0.b32.start [1/16] %v94, 128
    %103 = vxpose.xlu0.b32.cont [2/16] %v99, 128
    %104 = vxpose.xlu0.b32.cont [3/16] 0.0, 128
    %105 = vxpose.xlu0.b32.cont [4/16] 0.0, 128
    %106 = vxpose.xlu0.b32.cont [5/16] 0.0, 128
    %107 = vxpose.xlu0.b32.cont [6/16] 0.0, 128
    %108 = vxpose.xlu0.b32.cont [7/16] 0.0, 128
    %109 = vxpose.xlu0.b32.cont [8/16] 0.0, 128
    %110 = vxpose.xlu0.b32.cont [9/16] 0.0, 128
    %111 = vxpose.xlu0.b32.cont [10/16] 0.0, 128
    %112 = vxpose.xlu0.b32.cont [11/16] 0.0, 128
    %113 = vxpose.xlu0.b32.cont [12/16] 0.0, 128
    %114 = vxpose.xlu0.b32.cont [13/16] 0.0, 128
    %115 = vxpose.xlu0.b32.cont [14/16] 0.0, 128
    %116 = vxpose.xlu0.b32.cont [15/16] 0.0, 128
    %117 = vxpose.xlu0.b32.end [16/16] 0.0, 128
    %v118 = vpop.trf.xlu0
    %v119 = vpop.trf.xlu0
    %v120 = vpop.trf.xlu0
    %v121 = vpop.trf.xlu0
    %v122 = vpop.trf.xlu0
    %v123 = vpop.trf.xlu0
    %v124 = vpop.trf.xlu0
    %v125 = vpop.trf.xlu0
    %v126 = vpop.trf.xlu0
    %v127 = vpop.trf.xlu0
    %v128 = vpop.trf.xlu0
    %v129 = vpop.trf.xlu0
    %v130 = vpop.trf.xlu0
    %v131 = vpop.trf.xlu0
    %v132 = vpop.trf.xlu0
    %v133 = vpop.trf.xlu0
    %136 = vrot.lane.b32.xlu0 %v94, 120
    %v137 = vpop.permute.xlu0 %136
    %138 = vrot.lane.b32.xlu0 %v99, 120
    %v139 = vpop.permute.xlu0 %138
    %vm142 = vcmask 130048
    %v144 = vsel %vm142, %v118, 0
    %146 = vmatprep.subr.mxu0 0.0
    %147 = vmatpush1.msra.mxu0 0.0
    %148 = vmatprep.subr.mxu0 0.0
    %149 = vmatpush1.msra.mxu0 0.0
    %150 = vmatprep.subr.mxu0 0.0
    %151 = vmatpush1.msra.mxu0 0.0
    %152 = vmatprep.subr.mxu0 0.0
    %153 = vmatpush1.msra.mxu0 0.0
    %154 = vmatprep.subr.mxu0 0.0
    %155 = vmatpush1.msra.mxu0 0.0
    %156 = vmatprep.subr.mxu0 0.0
    %157 = vmatpush1.msra.mxu0 0.0
    %158 = vmatprep.subr.mxu0 0.0
    %159 = vmatpush1.msra.mxu0 0.0
    %160 = vmatprep.subr.mxu0 0.0
    %161 = vmatpush1.msra.mxu0 0.0
    %162 = vmatprep.subr.mxu0 0.0
    %163 = vmatpush1.msra.mxu0 0.0
    %164 = vmatprep.subr.mxu0 0.0
    %165 = vmatpush1.msra.mxu0 0.0
    %166 = vmatprep.subr.mxu0 0.0
    %167 = vmatpush1.msra.mxu0 0.0
    %168 = vmatprep.subr.mxu0 0.0
    %169 = vmatpush1.msra.mxu0 0.0
    %170 = vmatprep.subr.mxu0 0.0
    %171 = vmatpush1.msra.mxu0 0.0
    %172 = vmatprep.subr.mxu0 0.0
    %173 = vmatpush1.msra.mxu0 0.0
    %174 = vmatprep.subr.mxu0 0.0
    %175 = vmatpush1.msra.mxu0 %v139
    %176 = vmatprep.subr.mxu0 0.0
    %177 = vmatpush1.msra.mxu0 %v137
    %178 = vmatprep.subr.mxu0 0.0
    %179 = vmatpush2.msra.mxu0 0.0
    %180 = vmatprep.subr.mxu0 0.0
    %181 = vmatpush2.msra.mxu0 0.0
    %182 = vmatprep.subr.mxu0 0.0
    %183 = vmatpush2.msra.mxu0 0.0
    %184 = vmatprep.subr.mxu0 0.0
    %185 = vmatpush2.msra.mxu0 0.0
    %186 = vmatprep.subr.mxu0 0.0
    %187 = vmatpush2.msra.mxu0 0.0
    %188 = vmatprep.subr.mxu0 0.0
    %189 = vmatpush2.msra.mxu0 0.0
    %190 = vmatprep.subr.mxu0 0.0
    %191 = vmatpush2.msra.mxu0 0.0
    %192 = vmatprep.subr.mxu0 0.0
    %193 = vmatpush2.msra.mxu0 0.0
    %194 = vmatprep.subr.mxu0 0.0
    %195 = vmatpush2.msra.mxu0 0.0
    %196 = vmatprep.subr.mxu0 0.0
    %197 = vmatpush2.msra.mxu0 0.0
    %198 = vmatprep.subr.mxu0 0.0
    %199 = vmatpush2.msra.mxu0 0.0
    %200 = vmatprep.subr.mxu0 0.0
    %201 = vmatpush2.msra.mxu0 0.0
    %202 = vmatprep.subr.mxu0 0.0
    %203 = vmatpush2.msra.mxu0 0.0
    %204 = vmatprep.subr.mxu0 0.0
    %205 = vmatpush2.msra.mxu0 0.0
    %206 = vmatprep.subr.mxu0 0.0
    %207 = vmatpush2.msra.mxu0 0.0
    %208 = vmatprep.subr.mxu0 0.0
    %209 = vmatpush2.msra.mxu0 0.0
    %210 = vmatprep.mubr.f32.mxu0 0.0
    %211 = vmatmul.mubr.f32.gmra.mxu0 %v144
    %v212 = vpop.f32.mrf.mxu0
    %v213 = vadd.f32 0.0, %v212
    %v214 = vpop.f32.mrf.mxu0
    %215 = vdwg.mxu0
    %v216 = vmul.f32 %v213, 0.35355338
    %vm217 = vcmask 64512
    %v218 = vsel %vm217, %v216, -inf
    %219 = vmax.xlane.f32.xlu0 %v218
    %v220 = vpop.xlane.xlu0 %219
    %v221 = vsub.f32 %v216, %v220
    %v222 = vmul.f32 %v221, 1.442695
    %v223 = vpow.pop %v222
    %v224 = vsel %vm217, %v223, 0.0
    %225 = vadd.xlane.f32.xlu0 %v224
    %v226 = vpop.xlane.xlu0 %225
    %v227 = vrcp.pop %v226
    %v228 = vmul.f32 %v223, %v227
    %229 = vrot.lane.b32.xlu0 %v94, 112
    %v230 = vpop.permute.xlu0 %229
    %231 = vrot.lane.b32.xlu0 %v99, 112
    %v232 = vpop.permute.xlu0 %231
    %v233 = vsel %vm217, %v230, 0
    %v235 = vsel %vm217, %v232, 0
    %237 = vmatprep.subr.mxu0 0.0
    %238 = vmatpush1.msra.mxu0 0.0
    %239 = vmatprep.subr.mxu0 0.0
    %240 = vmatpush1.msra.mxu0 0.0
    %241 = vmatprep.subr.mxu0 0.0
    %242 = vmatpush1.msra.mxu0 0.0
    %243 = vmatprep.subr.mxu0 0.0
    %244 = vmatpush1.msra.mxu0 0.0
    %245 = vmatprep.subr.mxu0 0.0
    %246 = vmatpush1.msra.mxu0 0.0
    %247 = vmatprep.subr.mxu0 0.0
    %248 = vmatpush1.msra.mxu0 0.0
    %249 = vmatprep.subr.mxu0 0.0
    %250 = vmatpush1.msra.mxu0 0.0
    %251 = vmatprep.subr.mxu0 0.0
    %252 = vmatpush1.msra.mxu0 0.0
    %253 = vmatprep.subr.mxu0 0.0
    %254 = vmatpush1.msra.mxu0 0.0
    %255 = vmatprep.subr.mxu0 0.0
    %256 = vmatpush1.msra.mxu0 0.0
    %257 = vmatprep.subr.mxu0 0.0
    %258 = vmatpush1.msra.mxu0 0.0
    %259 = vmatprep.subr.mxu0 0.0
    %260 = vmatpush1.msra.mxu0 0.0
    %261 = vmatprep.subr.mxu0 0.0
    %262 = vmatpush1.msra.mxu0 0.0
    %263 = vmatprep.subr.mxu0 0.0
    %264 = vmatpush1.msra.mxu0 0.0
    %265 = vmatprep.subr.mxu0 0.0
    %266 = vmatpush1.msra.mxu0 0.0
    %267 = vmatprep.subr.mxu0 0.0
    %268 = vmatpush1.msra.mxu0 %v228
    %269 = vmatprep.subr.mxu0 0.0
    %270 = vmatpush2.msra.mxu0 0.0
    %271 = vmatprep.subr.mxu0 0.0
    %272 = vmatpush2.msra.mxu0 0.0
    %273 = vmatprep.subr.mxu0 0.0
    %274 = vmatpush2.msra.mxu0 0.0
    %275 = vmatprep.subr.mxu0 0.0
    %276 = vmatpush2.msra.mxu0 0.0
    %277 = vmatprep.subr.mxu0 0.0
    %278 = vmatpush2.msra.mxu0 0.0
    %279 = vmatprep.subr.mxu0 0.0
    %280 = vmatpush2.msra.mxu0 0.0
    %281 = vmatprep.subr.mxu0 0.0
    %282 = vmatpush2.msra.mxu0 0.0
    %283 = vmatprep.subr.mxu0 0.0
    %284 = vmatpush2.msra.mxu0 0.0
    %285 = vmatprep.subr.mxu0 0.0
    %286 = vmatpush2.msra.mxu0 0.0
    %287 = vmatprep.subr.mxu0 0.0
    %288 = vmatpush2.msra.mxu0 0.0
    %289 = vmatprep.subr.mxu0 0.0
    %290 = vmatpush2.msra.mxu0 0.0
    %291 = vmatprep.subr.mxu0 0.0
    %292 = vmatpush2.msra.mxu0 0.0
    %293 = vmatprep.subr.mxu0 0.0
    %294 = vmatpush2.msra.mxu0 0.0
    %295 = vmatprep.subr.mxu0 0.0
    %296 = vmatpush2.msra.mxu0 0.0
    %297 = vmatprep.subr.mxu0 0.0
    %298 = vmatpush2.msra.mxu0 0.0
    %299 = vmatprep.subr.mxu0 0.0
    %300 = vmatpush2.msra.mxu0 0.0
    %301 = vmatprep.mubr.f32.mxu0 0.0
    %302 = vmatmul.mubr.f32.gmra.mxu0 %v233
    %v303 = vpop.f32.mrf.mxu0
    %v304 = vadd.f32 0.0, %v303
    %v305 = vpop.f32.mrf.mxu0
    %306 = vmatprep.mubr.f32.mxu0 0.0
    %307 = vmatmul.mubr.f32.gmra.mxu0 %v235
    %v308 = vpop.f32.mrf.mxu0
    %v309 = vadd.f32 0.0, %v308
    %v310 = vpop.f32.mrf.mxu0
    %311 = vdwg.mxu0
    %318 = vrot.lane.b32.xlu0 %v14, 104
    %v319 = vpop.permute.xlu0 %318
    %320 = vrot.lane.b32.xlu0 %v15, 104
    %v321 = vpop.permute.xlu0 %320
    %322 = vrot.lane.b32.xlu0 %v16, 104
    %v323 = vpop.permute.xlu0 %322
    %324 = vrot.lane.b32.xlu0 %v17, 104
    %v325 = vpop.permute.xlu0 %324
    %326 = vrot.lane.b32.xlu0 %v18, 104
    %v327 = vpop.permute.xlu0 %326
    %328 = vrot.lane.b32.xlu0 %v19, 104
    %v329 = vpop.permute.xlu0 %328
    %v331 = vsel %vm217, %v304, 0
    %v334 = vsel %vm217, %v309, 0
    %v336 = vsel %vm217, %v319, 0
    %v338 = vsel %vm217, %v321, 0
    %v340 = vsel %vm217, %v323, 0
    %v342 = vsel %vm217, %v325, 0
    %v344 = vsel %vm217, %v327, 0
    %v346 = vsel %vm217, %v329, 0
    %348 = vmatprep.subr.mxu0 0.0
    %349 = vmatpush1.xpose.msra.mxu0 0.0
    %350 = vmatprep.subr.mxu0 0.0
    %351 = vmatpush1.xpose.msra.mxu0 0.0
    %352 = vmatprep.subr.mxu0 0.0
    %353 = vmatpush1.xpose.msra.mxu0 0.0
    %354 = vmatprep.subr.mxu0 0.0
    %355 = vmatpush1.xpose.msra.mxu0 0.0
    %356 = vmatprep.subr.mxu0 0.0
    %357 = vmatpush1.xpose.msra.mxu0 0.0
    %358 = vmatprep.subr.mxu0 0.0
    %359 = vmatpush1.xpose.msra.mxu0 0.0
    %360 = vmatprep.subr.mxu0 0.0
    %361 = vmatpush1.xpose.msra.mxu0 0.0
    %362 = vmatprep.subr.mxu0 0.0
    %363 = vmatpush1.xpose.msra.mxu0 0.0
    %364 = vmatprep.subr.mxu0 0.0
    %365 = vmatpush1.xpose.msra.mxu0 0.0
    %366 = vmatprep.subr.mxu0 0.0
    %367 = vmatpush1.xpose.msra.mxu0 0.0
    %368 = vmatprep.subr.mxu0 0.0
    %369 = vmatpush1.xpose.msra.mxu0 %v346
    %370 = vmatprep.subr.mxu0 0.0
    %371 = vmatpush1.xpose.msra.mxu0 %v344
    %372 = vmatprep.subr.mxu0 0.0
    %373 = vmatpush1.xpose.msra.mxu0 %v342
    %374 = vmatprep.subr.mxu0 0.0
    %375 = vmatpush1.xpose.msra.mxu0 %v340
    %376 = vmatprep.subr.mxu0 0.0
    %377 = vmatpush1.xpose.msra.mxu0 %v338
    %378 = vmatprep.subr.mxu0 0.0
    %379 = vmatpush1.xpose.msra.mxu0 %v336
    %380 = vmatprep.subr.mxu0 0.0
    %381 = vmatpush2.xpose.msra.mxu0 0.0
    %382 = vmatprep.subr.mxu0 0.0
    %383 = vmatpush2.xpose.msra.mxu0 0.0
    %384 = vmatprep.subr.mxu0 0.0
    %385 = vmatpush2.xpose.msra.mxu0 0.0
    %386 = vmatprep.subr.mxu0 0.0
    %387 = vmatpush2.xpose.msra.mxu0 0.0
    %388 = vmatprep.subr.mxu0 0.0
    %389 = vmatpush2.xpose.msra.mxu0 0.0
    %390 = vmatprep.subr.mxu0 0.0
    %391 = vmatpush2.xpose.msra.mxu0 0.0
    %392 = vmatprep.subr.mxu0 0.0
    %393 = vmatpush2.xpose.msra.mxu0 0.0
    %394 = vmatprep.subr.mxu0 0.0
    %395 = vmatpush2.xpose.msra.mxu0 0.0
    %396 = vmatprep.subr.mxu0 0.0
    %397 = vmatpush2.xpose.msra.mxu0 0.0
    %398 = vmatprep.subr.mxu0 0.0
    %399 = vmatpush2.xpose.msra.mxu0 0.0
    %400 = vmatprep.subr.mxu0 0.0
    %401 = vmatpush2.xpose.msra.mxu0 0.0
    %402 = vmatprep.subr.mxu0 0.0
    %403 = vmatpush2.xpose.msra.mxu0 0.0
    %404 = vmatprep.subr.mxu0 0.0
    %405 = vmatpush2.xpose.msra.mxu0 0.0
    %406 = vmatprep.subr.mxu0 0.0
    %407 = vmatpush2.xpose.msra.mxu0 0.0
    %408 = vmatprep.subr.mxu0 0.0
    %409 = vmatpush2.xpose.msra.mxu0 0.0
    %410 = vmatprep.subr.mxu0 0.0
    %411 = vmatpush2.xpose.msra.mxu0 0.0
    %412 = vmatprep.mubr.f32.mxu0 0.0
    %413 = vmatmul.mubr.f32.gmra.mxu0 %v331
    %v414 = vpop.f32.mrf.mxu0
    %v415 = vadd.f32 0.0, %v414
    %v416 = vpop.f32.mrf.mxu0
    %417 = vmatprep.mubr.f32.mxu0 0.0
    %418 = vmatmul.mubr.f32.gmra.mxu0 %v334
    %v419 = vpop.f32.mrf.mxu0
    %v420 = vadd.f32 0.0, %v419
    %v421 = vpop.f32.mrf.mxu0
    %422 = vdwg.mxu0
    %423 = vst.msk [vmem:[#allocation2] sm:$0xff] %vm20, %v415
    %424 = vst.msk [vmem:[#allocation2 + $0x8] sm:$0xff] %vm20, %v420
    // Predicated region
    $region10: #{tpu_custom_call.1} parent=1 // pred_check
      _
    $region11: #{tpu_custom_call.1} parent=1 // pred_check_branch
      %426 = sbr.rel (0) target = $region13
    $region12: #{tpu_custom_call.1} parent=1 // pred_region
      %s428 = ssub.s32 256, 256
      %429 = vsyncadd [#allocation3], %s428
      %s430 = sshll.u32 [#allocation2], 4
      %s431 = int_to_ptr.vmem [resolvable:$true] %s430
      %436 = dma.vmem_to_hbm [thread:$0]  %s431, 256, %s2, [#allocation3], 128, 128, 8
    $region13: #{tpu_custom_call.1} parent=1 // pred_fallthru
      _
    // Predicated region
    $region14: #{tpu_custom_call.1} parent=1 // pred_check
      _
    $region15: #{tpu_custom_call.1} parent=1 // pred_check_branch
      %438 = sbr.rel (0) target = $region17
    $region16: #{tpu_custom_call.1} parent=1 // pred_region
      %439 = dma.done [#allocation3], 256
    $region17: #{tpu_custom_call.1} parent=1 // pred_fallthru
      _
    %440 = vsyncpa [#allocation3], 1

</llo_original>
